<compile_context>
chip_gen: v7x
topology: tpu7x:2x2x1
jax: 0.10.0
libtpu: 0.0.40
codegen_flags: <defaults>
</compile_context>

<pallas_src>
import math

import jax
import jax.numpy as jnp
from jax.experimental import pallas as pl
from jax.experimental.pallas import tpu as pltpu

_LANE = 128              # vreg lane width
_SUB = 8                 # vreg sublane count
_BLOCK_BYTES = 2 << 20   # ~2 MiB per block buffer (x and out each double-buffered)


def _drop_path_kernel(mask_ref, x_ref, o_ref):
    """mask_ref: (B_TILE, 1) per-sample scale in x dtype.
    x_ref / o_ref: (B_TILE, F_TILE) block in VMEM."""
    o_ref[...] = x_ref[...] * mask_ref[...]   # lane-broadcast multiply, native dtype


def drop_path(x, *, drop_prob: float = 0.0, training: bool = False,
              scale_by_keep: bool = True, key=None, seed: int = 0):
    """JAX/Pallas equivalent of DropPath.forward.  x is (B, ...) (e.g. NCHW).

    NOTE: callers should pass a fresh `key` (or `seed`) per call / per layer;
    reusing the same seed drops the same samples every step.
    """
    if drop_prob == 0.0 or not training:
        return x

    keep_prob = 1.0 - drop_prob
    b = x.shape[0]
    f = math.prod(x.shape[1:]) if x.ndim > 1 else 1

    # --- per-sample mask, computed once (hoisted out of the tiled kernel) ---
    if key is None:
        key = jax.random.PRNGKey(seed)
    keep = jax.random.bernoulli(key, p=keep_prob, shape=(b,))
    mask = keep.astype(jnp.float32)
    if scale_by_keep and keep_prob > 0.0:
        mask = mask / jnp.float32(keep_prob)
    mask = mask.astype(x.dtype).reshape(b, 1)   # torch divides in x's dtype too

    itemsize = jnp.dtype(x.dtype).itemsize
    xf = x.reshape(b, f)

    # --- batch tile: multiple of 8 sublanes, or the full (small) batch ---
    b_tile = b if b <= _SUB else _SUB

    # --- feature layout: avoid HBM pad/slice passes whenever possible ---
    if f % _LANE == 0 or f * b_tile * itemsize <= _BLOCK_BYTES:
        fp, pad = f, 0                                   # no padding needed
    else:
        fp = pl.cdiv(f, _LANE) * _LANE                   # huge ragged F: pad to lanes
        pad = fp - f
        xf = jnp.pad(xf, ((0, 0), (0, pad)))

    # --- feature tile: lane-dense multiple of 128 within the block budget ---
    if fp % _LANE == 0:
        max_f_tile = max(_LANE, (_BLOCK_BYTES // (b_tile * itemsize)) // _LANE * _LANE)
        f_tile = min(fp, max_f_tile)
    else:
        f_tile = fp                                      # full (un-padded) feature dim

    # --- grow batch tile to fill the block budget when F is small ---
    if b > _SUB:
        rows_fit = (_BLOCK_BYTES // (f_tile * itemsize)) // _SUB * _SUB
        if rows_fit > b_tile:
            b_tile = min((b // _SUB) * _SUB, rows_fit)

    grid = (pl.cdiv(b, b_tile), pl.cdiv(fp, f_tile))

    out = pl.pallas_call(
        _drop_path_kernel,
        out_shape=jax.ShapeDtypeStruct((b, fp), x.dtype),
        grid=grid,
        in_specs=[
            pl.BlockSpec((b_tile, 1), lambda i, j: (i, 0)),        # per-sample mask
            pl.BlockSpec((b_tile, f_tile), lambda i, j: (i, j)),   # x block
        ],
        out_specs=pl.BlockSpec((b_tile, f_tile), lambda i, j: (i, j)),
        compiler_params=pltpu.CompilerParams(
            dimension_semantics=("parallel", "parallel")),
    )(mask, xf)

    if pad:
        out = out[:, :f]
    return out.reshape(x.shape)


class DropPath:
    """Drop paths (Stochastic Depth) per sample — Pallas-backed forward."""

    def __init__(self, drop_prob: float = 0.0, scale_by_keep: bool = True):
        self.drop_prob = drop_prob
        self.scale_by_keep = scale_by_keep
        self.training = True  # mirror nn.Module default train mode

    def __call__(self, x, *, key=None, seed: int = 0):
        return drop_path(x, drop_prob=self.drop_prob, training=self.training,
                         scale_by_keep=self.scale_by_keep, key=key, seed=seed)

    def extra_repr(self):
        return f"drop_prob={round(self.drop_prob, 3):0.3f}"


def _check(x, out, keep_prob):
    ok = True
    for b in range(x.shape[0]):
        row = out[b]
        dropped = bool(jnp.all(row == 0.0))
        kept = bool(jnp.allclose(row, x[b] / keep_prob, atol=1e-5, rtol=1e-5))
        ok = ok and (dropped or kept)
    return ok


if __name__ == "__main__":
    root = jax.random.PRNGKey(0)
    k1, k2, k3 = jax.random.split(root, 3)

    # Small NCHW input consistent with the module's usage: (B, C, H, W)
    x = jax.random.normal(k1, (2, 4, 16, 16), dtype=jnp.float32)
    module = DropPath(drop_prob=0.2, scale_by_keep=True)
    out = jax.block_until_ready(module(x, seed=1234))
    ok = _check(x, out, keep_prob=1.0 - module.drop_prob)

    # Ragged feature count (F = 105, not a multiple of 128) -> no-pad full-F path.
    x2 = jax.random.normal(k2, (2, 3, 5, 7), dtype=jnp.float32)
    out2 = jax.block_until_ready(
        drop_path(x2, drop_prob=0.5, training=True, scale_by_keep=True, seed=7))
    ok = ok and _check(x2, out2, keep_prob=0.5)

    # Batch > 8 exercises multi-sample blocks + ragged last batch block.
    x3 = jax.random.normal(k3, (12, 4, 16, 16), dtype=jnp.float32)
    out3 = jax.block_until_ready(
        drop_path(x3, drop_prob=0.3, training=True, scale_by_keep=True, seed=99))
    ok = ok and _check(x3, out3, keep_prob=0.7)

    # Eval-mode / drop_prob=0 identity path.
    module.training = False
    out_eval = jax.block_until_ready(module(x))
    ok = ok and bool(jnp.array_equal(out_eval, x))

    assert ok, "DropPath kernel output mismatch"
    print("KERNEL_OK")
</pallas_src>

<mosaic_0001>
module attributes {stable_mosaic.version = 11 : i64} {
  func.func @_drop_path_kernel(%arg0: i32, %arg1: i32, %arg2: memref<2x1xf32, #tpu.memory_space<vmem>>, %arg3: memref<2x1024xf32, #tpu.memory_space<vmem>>, %arg4: memref<2x1024xf32, #tpu.memory_space<vmem>>) attributes {dimension_semantics = [#tpu.dimension_semantics<parallel>, #tpu.dimension_semantics<parallel>], iteration_bounds = array<i64: 1, 1>, scalar_prefetch = 0 : i64, scratch_operands = 0 : i64, tpu.core_type = #tpu.core_type<tc>, window_params = [{transform_indices = @transform_0, window_bounds = array<i64: 2, 1>}, {transform_indices = @transform_1, window_bounds = array<i64: 2, 1024>}, {transform_indices = @transform_2, window_bounds = array<i64: 2, 1024>}]} {
    %c0 = arith.constant 0 : index
    %c0_0 = arith.constant 0 : index
    %0 = vector.load %arg3[%c0, %c0_0] : memref<2x1024xf32, #tpu.memory_space<vmem>>, vector<2x1024xf32>
    %c0_1 = arith.constant 0 : index
    %c0_2 = arith.constant 0 : index
    %1 = vector.load %arg2[%c0_1, %c0_2] : memref<2x1xf32, #tpu.memory_space<vmem>>, vector<2x1xf32>
    %2 = vector.broadcast %1 : vector<2x1xf32> to vector<2x1024xf32>
    %3 = arith.mulf %0, %2 : vector<2x1024xf32>
    %c0_3 = arith.constant 0 : index
    %c0_4 = arith.constant 0 : index
    %4 = vector.load %arg4[%c0_3, %c0_4] : memref<2x1024xf32, #tpu.memory_space<vmem>>, vector<2x1024xf32>
    tpu.vector_store %arg4[%c0_3, %c0_4], %3 {strides = array<i32>} : memref<2x1024xf32, #tpu.memory_space<vmem>>, vector<2x1024xf32>,
    return
  }
  func.func @transform_0(%arg0: i32, %arg1: i32) -> (i32, i32) {
    %c0_i32 = arith.constant 0 : i32
    %c0_i32_0 = arith.constant 0 : i32
    return %arg0, %c0_i32 : i32, i32
  }
  func.func @transform_1(%arg0: i32, %arg1: i32) -> (i32, i32) {
    %c0_i32 = arith.constant 0 : i32
    return %arg0, %arg1 : i32, i32
  }
  func.func @transform_2(%arg0: i32, %arg1: i32) -> (i32, i32) {
    %c0_i32 = arith.constant 0 : i32
    return %arg0, %arg1 : i32, i32
  }
}

</mosaic_0001>

<llo_original>
// kernel: tpu_custom_call.1
$region0: #{tpu_custom_call.1}
  #allocation0 [shape = 'u32[]', space=smem, size = 0x4, offset = 0x4, fixed_abs, tag = 'smem constant byte address 0x4 - core index']
  #allocation1 [shape = 'u32[144,128]{1,0:T(1,128)}', space=vmem, size = 0x12000, scoped, tag = 'internal scratch']
  %s0 = inlined_call_operand.vmem [shape: f32[2,1], index: 0, kind: input, shape index: {}]
  %s1 = inlined_call_operand.hbm [shape: f32[2,1024], index: 1, kind: input, shape index: {}]
  %s2 = inlined_call_operand.hbm [shape: f32[2,1024], index: 2, kind: output, shape index: {}]
  %s3 = sld [smem:[#allocation0]]
  $region22: #{tpu_custom_call.1} parent=0
    _
  %s5 = ssub.s32 1, %s3
  %s6 = scalar_select 0, %s5, %s3
  $region1: #{tpu_custom_call.1} parent=0
    #allocation2 [shape = 'u8[8192]{0}', space=vmem, size = 0x2000, scoped, tag = 'input window, operand 1, single buffered']
    #allocation3 [shape = 's32[1]{0}', space=sflag, size = 0x4, scoped, tag = 'scoped memory for tpu_custom_call.1']
    #allocation4 [shape = 's32[1]{0}', space=sflag, size = 0x4, scoped, tag = 'scoped memory for tpu_custom_call.1']
    #allocation5 [shape = 'u8[8192]{0}', space=vmem, size = 0x2000, scoped, tag = 'output window, operand 0, single buffered']
    %7 = vsyncpa [#allocation3], 0
    %8 = vsyncpa [#allocation4], 0
    // Predicated region
    $region2: #{tpu_custom_call.1} parent=1 // pred_check
      _
    $region3: #{tpu_custom_call.1} parent=1 // pred_check_branch
      %10 = sbr.rel (0) target = $region5
    $region4: #{tpu_custom_call.1} parent=1 // pred_region
      _
    $region5: #{tpu_custom_call.1} parent=1 // pred_fallthru
      _
    // Predicated region
    $region6: #{tpu_custom_call.1} parent=1 // pred_check
      _
    $region7: #{tpu_custom_call.1} parent=1 // pred_check_branch
      %12 = sbr.rel (0) target = $region9
    $region8: #{tpu_custom_call.1} parent=1 // pred_region
      %s14 = ssub.s32 256, 256
      %15 = vsyncadd [#allocation3], %s14
      %s17 = sshll.u32 [#allocation2], 4
      %s18 = int_to_ptr.vmem [resolvable:$true] %s17
      %20 = dma.hbm_to_vmem [thread:$0]  %s1, 256, %s18, [#allocation3]
    $region9: #{tpu_custom_call.1} parent=1 // pred_fallthru
      _
    // Predicated region
    $region10: #{tpu_custom_call.1} parent=1 // pred_check
      _
    $region11: #{tpu_custom_call.1} parent=1 // pred_check_branch
      %22 = sbr.rel (0) target = $region13
    $region12: #{tpu_custom_call.1} parent=1 // pred_region
      %23 = dma.done [#allocation3], 256
    $region13: #{tpu_custom_call.1} parent=1 // pred_fallthru
      _
    %v24 = vld [vmem:[#allocation2] sm:$0xff]
    %v25 = vld [vmem:[#allocation2 + $0x8] sm:$0xff]
    %v26 = vld [vmem:[%s0] sm:$0x3]
    %28 = vset.pattern.permute.xlu0 0
    %29 = vperm.xlu0 %28, %v26
    %v30 = vpop.permute.xlu0 %29
    %v32 = vunpack.c.l.s4 269488144
    %v33 = vunpack.c.0.s8 %v32
    %v34 = vlaneseq
    %v35 = vshrl.u32 %v34, 7
    %v36 = vsub.s32 %v33, %v35
    %v37 = vrot.slane %v30, %v36
    %v39 = vmul.f32 %v24, %v37
    %v40 = vmul.f32 %v25, %v37
    %41 = vst [vmem:[#allocation5] sm:$0xff] %v39
    %42 = vst [vmem:[#allocation5 + $0x8] sm:$0xff] %v40
    // Predicated region
    $region14: #{tpu_custom_call.1} parent=1 // pred_check
      _
    $region15: #{tpu_custom_call.1} parent=1 // pred_check_branch
      %44 = sbr.rel (0) target = $region17
    $region16: #{tpu_custom_call.1} parent=1 // pred_region
      %s46 = ssub.s32 256, 256
      %47 = vsyncadd [#allocation4], %s46
      %s49 = sshll.u32 [#allocation5], 4
      %s50 = int_to_ptr.vmem [resolvable:$true] %s49
      %52 = dma.vmem_to_hbm [thread:$0]  %s50, 256, %s2, [#allocation4]
    $region17: #{tpu_custom_call.1} parent=1 // pred_fallthru
      _
    // Predicated region
    $region18: #{tpu_custom_call.1} parent=1 // pred_check
      _
    $region19: #{tpu_custom_call.1} parent=1 // pred_check_branch
      %54 = sbr.rel (0) target = $region21
    $region20: #{tpu_custom_call.1} parent=1 // pred_region
      %55 = dma.done [#allocation4], 256
    $region21: #{tpu_custom_call.1} parent=1 // pred_fallthru
      _
    %56 = vsyncpa [#allocation3], 1
    %57 = vsyncpa [#allocation4], 1

</llo_original>
